<compile_context>
chip_gen: v6e
topology: v6e:2x2x1
jax: 0.10.0
libtpu: 0.0.40
codegen_flags: <defaults>
</compile_context>

<pallas_src>
import jax
import jax.numpy as jnp
from jax.experimental import pallas as pl
from jax.experimental.pallas import tpu as pltpu

NUM_EXPERTS = 16
IN_FEATURES = 10
OUT_FEATURES = 10                       # each SimpleExpert: Linear(10, 10)
E_COLS = NUM_EXPERTS * OUT_FEATURES     # 160 real expert output columns
GATE_PAD = 128                          # gate logits padded to one lane group
EXP_PAD = 256                           # expert columns padded to two lane groups
N_COLS = GATE_PAD + EXP_PAD             # 384 packed columns total
K_COLS = IN_FEATURES + 1                # +1 constant column folds the bias
TOKEN_TILE = 512                        # max tokens per grid step


def _round_up(n, m):
    return ((n + m - 1) // m) * m


def moe_kernel(x_ref, w_ref, r_ref, p_ref, o_ref):
    """Fused MoE layer for one token tile.

    x_ref: (T, K_COLS)        bf16 token tile, last column == 1 (bias row)
    w_ref: (K_COLS, N_COLS)   bf16 packed [gate (128-pad) | experts (256-pad)],
                              last row is the packed bias
    r_ref: (GATE_PAD, EXP_PAD) f32 constant 0/1 gate expander
    p_ref: (EXP_PAD, OUT)      f32 constant 0/1 expert-column reducer
    o_ref: (T, OUT)            f32 combined output
    """
    # One fused bf16 MXU pass: every expert pre-activation + gate logits + bias.
    y = jnp.dot(x_ref[...], w_ref[...], preferred_element_type=jnp.float32)

    # --- gating: numerically-stable softmax over the first 128 columns ---
    # (padded gate columns were biased to -1e9 -> exp underflows to exactly 0)
    logits = y[:, :GATE_PAD]                                          # (T, 128)
    m = jnp.max(logits, axis=-1, keepdims=True)
    e = jnp.exp(logits - m)
    denom = jnp.sum(e, axis=-1, keepdims=True)
    gates = e / denom                                                 # (T, 128)

    # --- experts: ReLU on the contiguously packed expert columns ---
    h = jnp.maximum(y[:, GATE_PAD:], 0.0)                             # (T, 256)

    # --- combine on the MXU: expand gates to per-column weights, then reduce ---
    gw = jnp.dot(gates, r_ref[...], preferred_element_type=jnp.float32)  # (T, 256)
    o_ref[...] = jnp.dot(h * gw, p_ref[...], preferred_element_type=jnp.float32)


def pack_params(wg, bg, w_experts, b_experts):
    """Pack gating + expert params into one bf16 weight (bias folded) and build
    the constant combine matrices.

    wg: (IN, E)  bg: (1, E)  w_experts: (E, IN, OUT)  b_experts: (E, OUT)
    returns:
      w_cat: (IN+1, N_COLS) bf16   [gate | experts], last row = bias
      r_mat: (GATE_PAD, EXP_PAD) f32   gate expander (0/1)
      p_mat: (EXP_PAD, OUT) f32        expert-column reducer (0/1)
    """
    E, IN, OUT = w_experts.shape

    # gate block, padded columns masked out of the softmax via a -1e9 bias
    wg_p = jnp.zeros((IN, GATE_PAD), jnp.float32).at[:, :E].set(wg)
    bg_p = jnp.full((1, GATE_PAD), -1e9, jnp.float32).at[:, :E].set(bg)

    # expert block: contiguous (IN, E*OUT) padded to EXP_PAD columns
    we = jnp.transpose(w_experts, (1, 0, 2)).reshape(IN, E * OUT)
    we_p = jnp.zeros((IN, EXP_PAD), jnp.float32).at[:, :E * OUT].set(we)
    be_p = jnp.zeros((1, EXP_PAD), jnp.float32).at[:, :E * OUT].set(
        b_experts.reshape(1, E * OUT))

    w = jnp.concatenate([wg_p, we_p], axis=1)                         # (IN, 384)
    b = jnp.concatenate([bg_p, be_p], axis=1)                         # (1, 384)
    w_cat = jnp.concatenate([w, b], axis=0).astype(jnp.bfloat16)      # (IN+1, 384)

    # constant 0/1 combine matrices (exactly representable; kept f32)
    col = jnp.arange(EXP_PAD)
    real = col < E * OUT
    r_mat = ((jnp.arange(GATE_PAD)[:, None] == (col // OUT)[None, :])
             & real[None, :]).astype(jnp.float32)                     # (128, 256)
    p_mat = (((col[:, None] % OUT) == jnp.arange(OUT)[None, :])
             & real[:, None]).astype(jnp.float32)                     # (256, 10)
    return w_cat, r_mat, p_mat


def moe_forward(x, w_cat, r_mat, p_mat, *, token_tile=TOKEN_TILE):
    """x: (B, IN) f32 -> (B, OUT_FEATURES) f32 MoE output."""
    B = x.shape[0]
    tile = min(token_tile, _round_up(B, 8))          # multiple of 8 sublanes
    Bp = _round_up(B, tile)
    n_tiles = Bp // tile

    # Append the constant bias column and cast the MXU operand to bf16; pad the
    # token axis up to a whole number of tiles (padded rows are all-zero).
    x1 = jnp.concatenate([x, jnp.ones((B, 1), x.dtype)], axis=1).astype(jnp.bfloat16)
    if Bp != B:
        x1 = jnp.pad(x1, ((0, Bp - B), (0, 0)))

    out = pl.pallas_call(
        moe_kernel,
        out_shape=jax.ShapeDtypeStruct((Bp, OUT_FEATURES), jnp.float32),
        grid=(n_tiles,),
        in_specs=[
            pl.BlockSpec((tile, K_COLS), lambda t: (t, 0)),
            pl.BlockSpec((K_COLS, N_COLS), lambda t: (0, 0)),
            pl.BlockSpec((GATE_PAD, EXP_PAD), lambda t: (0, 0)),
            pl.BlockSpec((EXP_PAD, OUT_FEATURES), lambda t: (0, 0)),
        ],
        out_specs=pl.BlockSpec((tile, OUT_FEATURES), lambda t: (t, 0)),
        compiler_params=pltpu.CompilerParams(
            dimension_semantics=("parallel",),
        ),
    )(x1, w_cat, r_mat, p_mat)
    return out[:B] if Bp != B else out


def moe_reference(x, wg, bg, w_experts, b_experts):
    """Pure-JAX f32 reference matching the PyTorch module."""
    gates = jax.nn.softmax(x @ wg + bg, axis=1)                       # (B, E)
    h = jax.nn.relu(jnp.einsum("bi,eio->beo", x, w_experts) + b_experts[None, :, :])
    return jnp.einsum("be,beo->bo", gates, h)                         # (B, OUT)


if __name__ == "__main__":
    key = jax.random.PRNGKey(0)
    k_x, k_wg, k_bg, k_we, k_be = jax.random.split(key, 5)

    # Deterministic init mimicking nn.Linear(fan_in=10): U(-1/sqrt(10), 1/sqrt(10)).
    bound = 1.0 / jnp.sqrt(jnp.float32(IN_FEATURES))
    wg = jax.random.uniform(k_wg, (IN_FEATURES, NUM_EXPERTS), jnp.float32, -bound, bound)
    bg = jax.random.uniform(k_bg, (1, NUM_EXPERTS), jnp.float32, -bound, bound)
    w_experts = jax.random.uniform(
        k_we, (NUM_EXPERTS, IN_FEATURES, OUT_FEATURES), jnp.float32, -bound, bound)
    b_experts = jax.random.uniform(
        k_be, (NUM_EXPERTS, OUT_FEATURES), jnp.float32, -bound, bound)

    w_cat, r_mat, p_mat = pack_params(wg, bg, w_experts, b_experts)

    # Small batched-token case (tolerance covers bf16 MXU operands, f32 accum).
    x = jax.random.uniform(k_x, (32, IN_FEATURES), jnp.float32)
    out = jax.block_until_ready(moe_forward(x, w_cat, r_mat, p_mat))
    ref = moe_reference(x, wg, bg, w_experts, b_experts)
    assert out.shape == (32, OUT_FEATURES)
    assert jnp.allclose(out, ref, atol=3e-2, rtol=3e-2)

    # Original module's input shape (1, 10), exercising the token-padding path.
    x1 = x[:1]
    out1 = jax.block_until_ready(moe_forward(x1, w_cat, r_mat, p_mat))
    ref1 = moe_reference(x1, wg, bg, w_experts, b_experts)
    assert out1.shape == (1, OUT_FEATURES)
    assert jnp.allclose(out1, ref1, atol=3e-2, rtol=3e-2)

    print("KERNEL_OK")
</pallas_src>

<mosaic_0001>
module attributes {stable_mosaic.version = 11 : i64} {
  func.func @moe_kernel(%arg0: i32, %arg1: memref<32x11xbf16, #tpu.memory_space<vmem>>, %arg2: memref<11x384xbf16, #tpu.memory_space<vmem>>, %arg3: memref<128x256xf32, #tpu.memory_space<vmem>>, %arg4: memref<256x10xf32, #tpu.memory_space<vmem>>, %arg5: memref<32x10xf32, #tpu.memory_space<vmem>>) attributes {dimension_semantics = [#tpu.dimension_semantics<parallel>], iteration_bounds = array<i64: 1>, scalar_prefetch = 0 : i64, scratch_operands = 0 : i64, tpu.core_type = #tpu.core_type<tc>, window_params = [{transform_indices = @transform_0, window_bounds = array<i64: 32, 11>}, {pipeline_mode = #tpu.pipeline_mode<synchronous>, transform_indices = @transform_1, window_bounds = array<i64: 11, 384>}, {pipeline_mode = #tpu.pipeline_mode<synchronous>, transform_indices = @transform_2, window_bounds = array<i64: 128, 256>}, {pipeline_mode = #tpu.pipeline_mode<synchronous>, transform_indices = @transform_3, window_bounds = array<i64: 256, 10>}, {transform_indices = @transform_4, window_bounds = array<i64: 32, 10>}]} {
    %c0 = arith.constant 0 : index
    %c0_0 = arith.constant 0 : index
    %0 = vector.load %arg1[%c0, %c0_0] : memref<32x11xbf16, #tpu.memory_space<vmem>>, vector<32x11xbf16>
    %c0_1 = arith.constant 0 : index
    %c0_2 = arith.constant 0 : index
    %1 = vector.load %arg2[%c0_1, %c0_2] : memref<11x384xbf16, #tpu.memory_space<vmem>>, vector<11x384xbf16>
    %cst = arith.constant dense<0.000000e+00> : vector<32x384xf32>
    %2 = tpu.matmul %0, %1, %cst {dimension_numbers = #tpu.dot_dimension_numbers<[1], [0], [0], [1], [0, 0, 1, 1], [], []>} : vector<32x11xbf16>, vector<11x384xbf16>, vector<32x384xf32> -> vector<32x384xf32>
    %3 = vector.extract_strided_slice %2 {offsets = [0, 0], sizes = [32, 128], strides = [1, 1]} : vector<32x384xf32> to vector<32x128xf32>
    %cst_3 = arith.constant dense<0xFF800000> : vector<32xf32>
    %4 = vector.multi_reduction <maximumf>, %3, %cst_3 [1] : vector<32x128xf32> to vector<32xf32>
    %5 = vector.shape_cast %4 : vector<32xf32> to vector<32x1xf32>
    %6 = vector.broadcast %5 : vector<32x1xf32> to vector<32x128xf32>
    %7 = arith.subf %3, %6 : vector<32x128xf32>
    %8 = math.exp %7 : vector<32x128xf32>
    %cst_4 = arith.constant dense<0.000000e+00> : vector<32xf32>
    %9 = vector.multi_reduction <add>, %8, %cst_4 [1] : vector<32x128xf32> to vector<32xf32>
    %10 = vector.shape_cast %9 : vector<32xf32> to vector<32x1xf32>
    %11 = vector.broadcast %10 : vector<32x1xf32> to vector<32x128xf32>
    %12 = arith.divf %8, %11 : vector<32x128xf32>
    %13 = vector.extract_strided_slice %2 {offsets = [0, 128], sizes = [32, 256], strides = [1, 1]} : vector<32x384xf32> to vector<32x256xf32>
    %cst_5 = arith.constant 0.000000e+00 : f32
    %14 = vector.broadcast %cst_5 : f32 to vector<32x256xf32>
    %15 = arith.maximumf %13, %14 : vector<32x256xf32>
    %c0_6 = arith.constant 0 : index
    %c0_7 = arith.constant 0 : index
    %16 = vector.load %arg3[%c0_6, %c0_7] : memref<128x256xf32, #tpu.memory_space<vmem>>, vector<128x256xf32>
    %cst_8 = arith.constant dense<0.000000e+00> : vector<32x256xf32>
    %17 = tpu.matmul %12, %16, %cst_8 {dimension_numbers = #tpu.dot_dimension_numbers<[1], [0], [0], [1], [0, 0, 1, 1], [], []>} : vector<32x128xf32>, vector<128x256xf32>, vector<32x256xf32> -> vector<32x256xf32>
    %18 = arith.mulf %15, %17 : vector<32x256xf32>
    %c0_9 = arith.constant 0 : index
    %c0_10 = arith.constant 0 : index
    %19 = vector.load %arg4[%c0_9, %c0_10] : memref<256x10xf32, #tpu.memory_space<vmem>>, vector<256x10xf32>
    %cst_11 = arith.constant dense<0.000000e+00> : vector<32x10xf32>
    %20 = tpu.matmul %18, %19, %cst_11 {dimension_numbers = #tpu.dot_dimension_numbers<[1], [0], [0], [1], [0, 0, 1, 1], [], []>} : vector<32x256xf32>, vector<256x10xf32>, vector<32x10xf32> -> vector<32x10xf32>
    %c0_12 = arith.constant 0 : index
    %c0_13 = arith.constant 0 : index
    %21 = vector.load %arg5[%c0_12, %c0_13] : memref<32x10xf32, #tpu.memory_space<vmem>>, vector<32x10xf32>
    tpu.vector_store %arg5[%c0_12, %c0_13], %20 {strides = array<i32>} : memref<32x10xf32, #tpu.memory_space<vmem>>, vector<32x10xf32>,
    return
  }
  func.func @transform_0(%arg0: i32) -> (i32, i32) {
    %c0_i32 = arith.constant 0 : i32
    %c0_i32_0 = arith.constant 0 : i32
    return %arg0, %c0_i32 : i32, i32
  }
  func.func @transform_1(%arg0: i32) -> (i32, i32) {
    %c0_i32 = arith.constant 0 : i32
    %c0_i32_0 = arith.constant 0 : i32
    %c0_i32_1 = arith.constant 0 : i32
    return %c0_i32, %c0_i32_0 : i32, i32
  }
  func.func @transform_2(%arg0: i32) -> (i32, i32) {
    %c0_i32 = arith.constant 0 : i32
    %c0_i32_0 = arith.constant 0 : i32
    %c0_i32_1 = arith.constant 0 : i32
    return %c0_i32, %c0_i32_0 : i32, i32
  }
  func.func @transform_3(%arg0: i32) -> (i32, i32) {
    %c0_i32 = arith.constant 0 : i32
    %c0_i32_0 = arith.constant 0 : i32
    %c0_i32_1 = arith.constant 0 : i32
    return %c0_i32, %c0_i32_0 : i32, i32
  }
  func.func @transform_4(%arg0: i32) -> (i32, i32) {
    %c0_i32 = arith.constant 0 : i32
    %c0_i32_0 = arith.constant 0 : i32
    return %arg0, %c0_i32 : i32, i32
  }
}

</mosaic_0001>

<llo_original>
// kernel: tpu_custom_call.1
$region0: #{tpu_custom_call.1}
  #allocation0 [shape = 'u32[]', space=smem, size = 0x4, offset = 0x4, fixed_abs, tag = 'smem constant byte address 0x4 - core index']
  #allocation1 [shape = 'u32[144,128]{1,0:T(1,128)}', space=vmem, size = 0x12000, scoped, tag = 'internal scratch']
  %s0 = inlined_call_operand.vmem [shape: bf16[32,11], index: 0, kind: input, shape index: {}]
  %s1 = inlined_call_operand.vmem [shape: bf16[11,384], index: 1, kind: input, shape index: {}]
  %s2 = inlined_call_operand.vmem [shape: f32[128,256], index: 2, kind: input, shape index: {}]
  %s3 = inlined_call_operand.vmem [shape: f32[256,10], index: 3, kind: input, shape index: {}]
  %s4 = inlined_call_operand.vmem [shape: f32[32,10], index: 4, kind: output, shape index: {}]
  %s5 = sld [smem:[#allocation0]]
  $region26: #{tpu_custom_call.1} parent=0
    _
  %s7 = ssub.s32 1, %s5
  %s8 = scalar_select 0, %s7, %s5
  // Predicated region
  $region2: #{tpu_custom_call.1} parent=0 // pred_check
    _
  $region3: #{tpu_custom_call.1} parent=0 // pred_check_branch
    %10 = sbr.rel (0) target = $region5
  $region4: #{tpu_custom_call.1} parent=0 // pred_region
    _
  $region5: #{tpu_custom_call.1} parent=0 // pred_fallthru
    _
  // Predicated region
  $region6: #{tpu_custom_call.1} parent=0 // pred_check
    _
  $region7: #{tpu_custom_call.1} parent=0 // pred_check_branch
    %12 = sbr.rel (0) target = $region9
  $region8: #{tpu_custom_call.1} parent=0 // pred_region
    _
  $region9: #{tpu_custom_call.1} parent=0 // pred_fallthru
    _
  // Predicated region
  $region10: #{tpu_custom_call.1} parent=0 // pred_check
    _
  $region11: #{tpu_custom_call.1} parent=0 // pred_check_branch
    %14 = sbr.rel (0) target = $region13
  $region12: #{tpu_custom_call.1} parent=0 // pred_region
    _
  $region13: #{tpu_custom_call.1} parent=0 // pred_fallthru
    _
  // Predicated region
  $region14: #{tpu_custom_call.1} parent=0 // pred_check
    _
  $region15: #{tpu_custom_call.1} parent=0 // pred_check_branch
    %16 = sbr.rel (0) target = $region17
  $region16: #{tpu_custom_call.1} parent=0 // pred_region
    _
  $region17: #{tpu_custom_call.1} parent=0 // pred_fallthru
    _
  %v18 = vld [vmem:[%s0] sm:$0xf]
  %v19 = vld [vmem:[%s0 + $0x4] sm:$0xf]
  %v20 = vld [vmem:[%s0 + $0x8] sm:$0xf]
  %v21 = vld [vmem:[%s0 + $0xc] sm:$0xf]
  %v22 = vld [vmem:[%s1] sm:$0xff]
  %v23 = vld [vmem:[%s1 + $0x8] sm:$0xf]
  %v24 = vld [vmem:[%s1 + $0xc] sm:$0x33]
  %v25 = vld [vmem:[%s1 + $0x14] sm:$0x3]
  %v30 = vunpack.c.l.b16 %v18
  %v31 = vunpack.c.l.b16 %v19
  %v32 = vunpack.c.l.b16 %v20
  %v33 = vunpack.c.l.b16 %v21
  %v34 = vpack.c.b16 %v31, %v30
  %v35 = vpack.c.b16 %v33, %v32
  %v40 = vunpack.c.l.b16 %v22
  %v41 = vunpack.c.h.b16 %v22
  %v42 = vunpack.c.l.b16 %v23
  %v43 = vunpack.c.l.b16 %v24
  %v44 = vunpack.c.h.b16 %v24
  %v45 = vunpack.c.l.b16 %v25
  %v46 = vpack.c.b16 %v43, %v40
  %v47 = vpack.c.b16 %v44, %v41
  %v48 = vpack.c.b16 %v45, %v42
  %vm49 = vcmask 89088
  %v51 = vsel %vm49, %v34, 0
  %v54 = vsel %vm49, %v35, 0
  %vm56 = vcmask 1044480
  %vm57 = vcmask 1045504
  %v58 = vsel %vm56, 4294967295, 65535
  %v59 = vsel %vm57, %v58, 0
  %v61 = vand.u32 %v46, %v59
  %v64 = vand.u32 %v47, %v59
  %v67 = vand.u32 %v48, %v59
  %69 = vmatprep.subr.bf16.mxu0 0
  %70 = vmatpush1.bf16.msra.mxu0 0
  %71 = vmatprep.subr.bf16.mxu0 0
  %72 = vmatpush1.bf16.msra.mxu0 0
  %73 = vmatprep.subr.bf16.mxu0 0
  %74 = vmatpush1.bf16.msra.mxu0 0
  %75 = vmatprep.subr.bf16.mxu0 0
  %76 = vmatpush1.bf16.msra.mxu0 0
  %77 = vmatprep.subr.bf16.mxu0 0
  %78 = vmatpush1.bf16.msra.mxu0 0
  %79 = vmatprep.subr.bf16.mxu0 0
  %80 = vmatpush1.bf16.msra.mxu0 0
  %81 = vmatprep.subr.bf16.mxu0 0
  %82 = vmatpush1.bf16.msra.mxu0 0
  %83 = vmatprep.subr.bf16.mxu0 %v64
  %84 = vmatpush1.bf16.msra.mxu0 %v61
  %85 = vmatprep.subr.bf16.mxu0 0
  %86 = vmatpush2.bf16.msra.mxu0 0
  %87 = vmatprep.subr.bf16.mxu0 0
  %88 = vmatpush2.bf16.msra.mxu0 0
  %89 = vmatprep.subr.bf16.mxu0 0
  %90 = vmatpush2.bf16.msra.mxu0 0
  %91 = vmatprep.subr.bf16.mxu0 0
  %92 = vmatpush2.bf16.msra.mxu0 0
  %93 = vmatprep.subr.bf16.mxu0 0
  %94 = vmatpush2.bf16.msra.mxu0 0
  %95 = vmatprep.subr.bf16.mxu0 0
  %96 = vmatpush2.bf16.msra.mxu0 0
  %97 = vmatprep.subr.bf16.mxu0 0
  %98 = vmatpush2.bf16.msra.mxu0 0
  %99 = vmatprep.subr.bf16.mxu0 0
  %100 = vmatpush2.bf16.msra.mxu0 0
  %101 = vmatprep.mubr.bf16.mxu0 0
  %102 = vmatmul.mubr.bf16.gmra.mxu0 %v51
  %v103 = vpop.f32.mrf.mxu0
  %v104 = vadd.f32 0.0, %v103
  %v105 = vpop.f32.mrf.mxu0
  %v106 = vadd.f32 0.0, %v105
  %v107 = vpop.f32.mrf.mxu0
  %v108 = vadd.f32 0.0, %v107
  %v109 = vpop.f32.mrf.mxu0
  %v110 = vadd.f32 0.0, %v109
  %111 = vmatprep.mubr.bf16.mxu0 0
  %112 = vmatmul.mubr.bf16.gmra.mxu0 %v54
  %v113 = vpop.f32.mrf.mxu0
  %v114 = vadd.f32 0.0, %v113
  %v115 = vpop.f32.mrf.mxu0
  %v116 = vadd.f32 0.0, %v115
  %v117 = vpop.f32.mrf.mxu0
  %v118 = vadd.f32 0.0, %v117
  %v119 = vpop.f32.mrf.mxu0
  %v120 = vadd.f32 0.0, %v119
  %121 = vdwg.mxu0
  %122 = vmatprep.subr.bf16.mxu0 0
  %123 = vmatpush1.bf16.msra.mxu0 0
  %124 = vmatprep.subr.bf16.mxu0 0
  %125 = vmatpush1.bf16.msra.mxu0 0
  %126 = vmatprep.subr.bf16.mxu0 0
  %127 = vmatpush1.bf16.msra.mxu0 0
  %128 = vmatprep.subr.bf16.mxu0 0
  %129 = vmatpush1.bf16.msra.mxu0 0
  %130 = vmatprep.subr.bf16.mxu0 0
  %131 = vmatpush1.bf16.msra.mxu0 0
  %132 = vmatprep.subr.bf16.mxu0 0
  %133 = vmatpush1.bf16.msra.mxu0 0
  %134 = vmatprep.subr.bf16.mxu0 0
  %135 = vmatpush1.bf16.msra.mxu0 0
  %136 = vmatprep.subr.bf16.mxu0 0
  %137 = vmatpush1.bf16.msra.mxu0 %v67
  %138 = vmatprep.subr.bf16.mxu0 0
  %139 = vmatpush2.bf16.msra.mxu0 0
  %140 = vmatprep.subr.bf16.mxu0 0
  %141 = vmatpush2.bf16.msra.mxu0 0
  %142 = vmatprep.subr.bf16.mxu0 0
  %143 = vmatpush2.bf16.msra.mxu0 0
  %144 = vmatprep.subr.bf16.mxu0 0
  %145 = vmatpush2.bf16.msra.mxu0 0
  %146 = vmatprep.subr.bf16.mxu0 0
  %147 = vmatpush2.bf16.msra.mxu0 0
  %148 = vmatprep.subr.bf16.mxu0 0
  %149 = vmatpush2.bf16.msra.mxu0 0
  %150 = vmatprep.subr.bf16.mxu0 0
  %151 = vmatpush2.bf16.msra.mxu0 0
  %152 = vmatprep.subr.bf16.mxu0 0
  %153 = vmatpush2.bf16.msra.mxu0 0
  %154 = vmatprep.mubr.bf16.mxu0 0
  %155 = vmatmul.mubr.bf16.gmra.mxu0 %v51
  %v156 = vpop.f32.mrf.mxu0
  %v157 = vadd.f32 0.0, %v156
  %v158 = vpop.f32.mrf.mxu0
  %v159 = vpop.f32.mrf.mxu0
  %v160 = vadd.f32 0.0, %v159
  %v161 = vpop.f32.mrf.mxu0
  %162 = vmatprep.mubr.bf16.mxu0 0
  %163 = vmatmul.mubr.bf16.gmra.mxu0 %v54
  %v164 = vpop.f32.mrf.mxu0
  %v165 = vadd.f32 0.0, %v164
  %v166 = vpop.f32.mrf.mxu0
  %v167 = vpop.f32.mrf.mxu0
  %v168 = vadd.f32 0.0, %v167
  %v169 = vpop.f32.mrf.mxu0
  %170 = vdwg.mxu0
  %171 = vmax.xlane.f32.xlu0 %v104
  %v172 = vpop.xlane.xlu0 %171
  %173 = vmax.xlane.f32.xlu0 %v108
  %v174 = vpop.xlane.xlu0 %173
  %175 = vmax.xlane.f32.xlu0 %v114
  %v176 = vpop.xlane.xlu0 %175
  %177 = vmax.xlane.f32.xlu0 %v118
  %v178 = vpop.xlane.xlu0 %177
  %v179 = vsub.f32 %v104, %v172
  %v180 = vsub.f32 %v108, %v174
  %v181 = vsub.f32 %v114, %v176
  %v182 = vsub.f32 %v118, %v178
  %v183 = vmul.f32 %v179, 1.442695
  %v184 = vpow.pop %v183
  %v185 = vmul.f32 %v180, 1.442695
  %v186 = vpow.pop %v185
  %v187 = vmul.f32 %v181, 1.442695
  %v188 = vpow.pop %v187
  %v189 = vmul.f32 %v182, 1.442695
  %v190 = vpow.pop %v189
  %191 = vadd.xlane.f32.xlu0 %v184
  %v192 = vpop.xlane.xlu0 %191
  %193 = vadd.xlane.f32.xlu0 %v186
  %v194 = vpop.xlane.xlu0 %193
  %195 = vadd.xlane.f32.xlu0 %v188
  %v196 = vpop.xlane.xlu0 %195
  %197 = vadd.xlane.f32.xlu0 %v190
  %v198 = vpop.xlane.xlu0 %197
  %v199 = vrcp.pop %v192
  %v200 = vmul.f32 %v184, %v199
  %v201 = vrcp.pop %v194
  %v202 = vmul.f32 %v186, %v201
  %v203 = vrcp.pop %v196
  %v204 = vmul.f32 %v188, %v203
  %v205 = vrcp.pop %v198
  %v206 = vmul.f32 %v190, %v205
  %v207 = vmax.f32 %v106, 0.0
  %v208 = vmax.f32 %v157, 0.0
  %v209 = vmax.f32 %v110, 0.0
  %v210 = vmax.f32 %v160, 0.0
  %v211 = vmax.f32 %v116, 0.0
  %v212 = vmax.f32 %v165, 0.0
  %v213 = vmax.f32 %v120, 0.0
  %v214 = vmax.f32 %v168, 0.0
  %v215 = vld [vmem:[%s2] sm:$0xff]
  %v216 = vld [vmem:[%s2 + $0x8] sm:$0xff]
  %v217 = vld [vmem:[%s2 + $0x10] sm:$0xff]
  %v218 = vld [vmem:[%s2 + $0x18] sm:$0xff]
  %v219 = vld [vmem:[%s2 + $0x20] sm:$0xff]
  %v220 = vld [vmem:[%s2 + $0x28] sm:$0xff]
  %v221 = vld [vmem:[%s2 + $0x30] sm:$0xff]
  %v222 = vld [vmem:[%s2 + $0x38] sm:$0xff]
  %v223 = vld [vmem:[%s2 + $0x40] sm:$0xff]
  %v224 = vld [vmem:[%s2 + $0x48] sm:$0xff]
  %v225 = vld [vmem:[%s2 + $0x50] sm:$0xff]
  %v226 = vld [vmem:[%s2 + $0x58] sm:$0xff]
  %v227 = vld [vmem:[%s2 + $0x60] sm:$0xff]
  %v228 = vld [vmem:[%s2 + $0x68] sm:$0xff]
  %v229 = vld [vmem:[%s2 + $0x70] sm:$0xff]
  %v230 = vld [vmem:[%s2 + $0x78] sm:$0xff]
  %v231 = vld [vmem:[%s2 + $0x80] sm:$0xff]
  %v232 = vld [vmem:[%s2 + $0x88] sm:$0xff]
  %v233 = vld [vmem:[%s2 + $0x90] sm:$0xff]
  %v234 = vld [vmem:[%s2 + $0x98] sm:$0xff]
  %v235 = vld [vmem:[%s2 + $0xa0] sm:$0xff]
  %v236 = vld [vmem:[%s2 + $0xa8] sm:$0xff]
  %v237 = vld [vmem:[%s2 + $0xb0] sm:$0xff]
  %v238 = vld [vmem:[%s2 + $0xb8] sm:$0xff]
  %v239 = vld [vmem:[%s2 + $0xc0] sm:$0xff]
  %v240 = vld [vmem:[%s2 + $0xc8] sm:$0xff]
  %v241 = vld [vmem:[%s2 + $0xd0] sm:$0xff]
  %v242 = vld [vmem:[%s2 + $0xd8] sm:$0xff]
  %v243 = vld [vmem:[%s2 + $0xe0] sm:$0xff]
  %v244 = vld [vmem:[%s2 + $0xe8] sm:$0xff]
  %v245 = vld [vmem:[%s2 + $0xf0] sm:$0xff]
  %v246 = vld [vmem:[%s2 + $0xf8] sm:$0xff]
  %247 = vmatprep.subr.mxu0 %v246
  %248 = vmatpush1.msra.mxu0 %v245
  %249 = vmatprep.subr.mxu0 %v244
  %250 = vmatpush1.msra.mxu0 %v243
  %251 = vmatprep.subr.mxu0 %v242
  %252 = vmatpush1.msra.mxu0 %v241
  %253 = vmatprep.subr.mxu0 %v240
  %254 = vmatpush1.msra.mxu0 %v239
  %255 = vmatprep.subr.mxu0 %v238
  %256 = vmatpush1.msra.mxu0 %v237
  %257 = vmatprep.subr.mxu0 %v236
  %258 = vmatpush1.msra.mxu0 %v235
  %259 = vmatprep.subr.mxu0 %v234
  %260 = vmatpush1.msra.mxu0 %v233
  %261 = vmatprep.subr.mxu0 %v232
  %262 = vmatpush1.msra.mxu0 %v231
  %263 = vmatprep.subr.mxu0 %v230
  %264 = vmatpush1.msra.mxu0 %v229
  %265 = vmatprep.subr.mxu0 %v228
  %266 = vmatpush1.msra.mxu0 %v227
  %267 = vmatprep.subr.mxu0 %v226
  %268 = vmatpush1.msra.mxu0 %v225
  %269 = vmatprep.subr.mxu0 %v224
  %270 = vmatpush1.msra.mxu0 %v223
  %271 = vmatprep.subr.mxu0 %v222
  %272 = vmatpush1.msra.mxu0 %v221
  %273 = vmatprep.subr.mxu0 %v220
  %274 = vmatpush1.msra.mxu0 %v219
  %275 = vmatprep.subr.mxu0 %v218
  %276 = vmatpush1.msra.mxu0 %v217
  %277 = vmatprep.subr.mxu0 %v216
  %278 = vmatpush1.msra.mxu0 %v215
  %279 = vmatprep.subr.mxu0 0.0
  %280 = vmatpush2.msra.mxu0 0.0
  %281 = vmatprep.subr.mxu0 0.0
  %282 = vmatpush2.msra.mxu0 0.0
  %283 = vmatprep.subr.mxu0 0.0
  %284 = vmatpush2.msra.mxu0 0.0
  %285 = vmatprep.subr.mxu0 0.0
  %286 = vmatpush2.msra.mxu0 0.0
  %287 = vmatprep.subr.mxu0 0.0
  %288 = vmatpush2.msra.mxu0 0.0
  %289 = vmatprep.subr.mxu0 0.0
  %290 = vmatpush2.msra.mxu0 0.0
  %291 = vmatprep.subr.mxu0 0.0
  %292 = vmatpush2.msra.mxu0 0.0
  %293 = vmatprep.subr.mxu0 0.0
  %294 = vmatpush2.msra.mxu0 0.0
  %295 = vmatprep.subr.mxu0 0.0
  %296 = vmatpush2.msra.mxu0 0.0
  %297 = vmatprep.subr.mxu0 0.0
  %298 = vmatpush2.msra.mxu0 0.0
  %299 = vmatprep.subr.mxu0 0.0
  %300 = vmatpush2.msra.mxu0 0.0
  %301 = vmatprep.subr.mxu0 0.0
  %302 = vmatpush2.msra.mxu0 0.0
  %303 = vmatprep.subr.mxu0 0.0
  %304 = vmatpush2.msra.mxu0 0.0
  %305 = vmatprep.subr.mxu0 0.0
  %306 = vmatpush2.msra.mxu0 0.0
  %307 = vmatprep.subr.mxu0 0.0
  %308 = vmatpush2.msra.mxu0 0.0
  %309 = vmatprep.subr.mxu0 0.0
  %310 = vmatpush2.msra.mxu0 0.0
  %311 = vmatprep.mubr.f32.mxu0 0.0
  %312 = vmatmul.mubr.f32.gmra.mxu0 %v200
  %v313 = vpop.f32.mrf.mxu0
  %v314 = vadd.f32 0.0, %v313
  %v315 = vpop.f32.mrf.mxu0
  %v316 = vadd.f32 0.0, %v315
  %317 = vmatprep.mubr.f32.mxu0 0.0
  %318 = vmatmul.mubr.f32.gmra.mxu0 %v202
  %v319 = vpop.f32.mrf.mxu0
  %v320 = vadd.f32 0.0, %v319
  %v321 = vpop.f32.mrf.mxu0
  %v322 = vadd.f32 0.0, %v321
  %323 = vmatprep.mubr.f32.mxu0 0.0
  %324 = vmatmul.mubr.f32.gmra.mxu0 %v204
  %v325 = vpop.f32.mrf.mxu0
  %v326 = vadd.f32 0.0, %v325
  %v327 = vpop.f32.mrf.mxu0
  %v328 = vadd.f32 0.0, %v327
  %329 = vmatprep.mubr.f32.mxu0 0.0
  %330 = vmatmul.mubr.f32.gmra.mxu0 %v206
  %v331 = vpop.f32.mrf.mxu0
  %v332 = vadd.f32 0.0, %v331
  %v333 = vpop.f32.mrf.mxu0
  %v334 = vadd.f32 0.0, %v333
  %335 = vdwg.mxu0
  %v336 = vmul.f32 %v207, %v314
  %v337 = vmul.f32 %v208, %v316
  %v338 = vmul.f32 %v209, %v320
  %v339 = vmul.f32 %v210, %v322
  %v340 = vmul.f32 %v211, %v326
  %v341 = vmul.f32 %v212, %v328
  %v342 = vmul.f32 %v213, %v332
  %v343 = vmul.f32 %v214, %v334
  %v344 = vld [vmem:[%s3] sm:$0xff]
  %v345 = vld [vmem:[%s3 + $0x8] sm:$0xff]
  %v346 = vld [vmem:[%s3 + $0x10] sm:$0xff]
  %v347 = vld [vmem:[%s3 + $0x18] sm:$0xff]
  %v348 = vld [vmem:[%s3 + $0x20] sm:$0xff]
  %v349 = vld [vmem:[%s3 + $0x28] sm:$0xff]
  %v350 = vld [vmem:[%s3 + $0x30] sm:$0xff]
  %v351 = vld [vmem:[%s3 + $0x38] sm:$0xff]
  %v352 = vld [vmem:[%s3 + $0x40] sm:$0xff]
  %v353 = vld [vmem:[%s3 + $0x48] sm:$0xff]
  %v354 = vld [vmem:[%s3 + $0x50] sm:$0xff]
  %v355 = vld [vmem:[%s3 + $0x58] sm:$0xff]
  %v356 = vld [vmem:[%s3 + $0x60] sm:$0xff]
  %v357 = vld [vmem:[%s3 + $0x68] sm:$0xff]
  %v358 = vld [vmem:[%s3 + $0x70] sm:$0xff]
  %v359 = vld [vmem:[%s3 + $0x78] sm:$0xff]
  %v360 = vld [vmem:[%s3 + $0x80] sm:$0xff]
  %v361 = vld [vmem:[%s3 + $0x88] sm:$0xff]
  %v362 = vld [vmem:[%s3 + $0x90] sm:$0xff]
  %v363 = vld [vmem:[%s3 + $0x98] sm:$0xff]
  %v364 = vld [vmem:[%s3 + $0xa0] sm:$0xff]
  %v365 = vld [vmem:[%s3 + $0xa8] sm:$0xff]
  %v366 = vld [vmem:[%s3 + $0xb0] sm:$0xff]
  %v367 = vld [vmem:[%s3 + $0xb8] sm:$0xff]
  %v368 = vld [vmem:[%s3 + $0xc0] sm:$0xff]
  %v369 = vld [vmem:[%s3 + $0xc8] sm:$0xff]
  %v370 = vld [vmem:[%s3 + $0xd0] sm:$0xff]
  %v371 = vld [vmem:[%s3 + $0xd8] sm:$0xff]
  %v372 = vld [vmem:[%s3 + $0xe0] sm:$0xff]
  %v373 = vld [vmem:[%s3 + $0xe8] sm:$0xff]
  %v374 = vld [vmem:[%s3 + $0xf0] sm:$0xff]
  %v375 = vld [vmem:[%s3 + $0xf8] sm:$0xff]
  %376 = vmatprep.subr.mxu0 0.0
  %377 = vmatpush1.msra.mxu0 %v359
  %378 = vmatprep.subr.mxu0 0.0
  %379 = vmatpush1.msra.mxu0 %v358
  %380 = vmatprep.subr.mxu0 0.0
  %381 = vmatpush1.msra.mxu0 %v357
  %382 = vmatprep.subr.mxu0 0.0
  %383 = vmatpush1.msra.mxu0 %v356
  %384 = vmatprep.subr.mxu0 0.0
  %385 = vmatpush1.msra.mxu0 %v355
  %386 = vmatprep.subr.mxu0 0.0
  %387 = vmatpush1.msra.mxu0 %v354
  %388 = vmatprep.subr.mxu0 0.0
  %389 = vmatpush1.msra.mxu0 %v353
  %390 = vmatprep.subr.mxu0 0.0
  %391 = vmatpush1.msra.mxu0 %v352
  %392 = vmatprep.subr.mxu0 0.0
  %393 = vmatpush1.msra.mxu0 %v351
  %394 = vmatprep.subr.mxu0 0.0
  %395 = vmatpush1.msra.mxu0 %v350
  %396 = vmatprep.subr.mxu0 0.0
  %397 = vmatpush1.msra.mxu0 %v349
  %398 = vmatprep.subr.mxu0 0.0
  %399 = vmatpush1.msra.mxu0 %v348
  %400 = vmatprep.subr.mxu0 0.0
  %401 = vmatpush1.msra.mxu0 %v347
  %402 = vmatprep.subr.mxu0 0.0
  %403 = vmatpush1.msra.mxu0 %v346
  %404 = vmatprep.subr.mxu0 0.0
  %405 = vmatpush1.msra.mxu0 %v345
  %406 = vmatprep.subr.mxu0 0.0
  %407 = vmatpush1.msra.mxu0 %v344
  %408 = vmatprep.subr.mxu0 0.0
  %409 = vmatpush2.msra.mxu0 %v375
  %410 = vmatprep.subr.mxu0 0.0
  %411 = vmatpush2.msra.mxu0 %v374
  %412 = vmatprep.subr.mxu0 0.0
  %413 = vmatpush2.msra.mxu0 %v373
  %414 = vmatprep.subr.mxu0 0.0
  %415 = vmatpush2.msra.mxu0 %v372
  %416 = vmatprep.subr.mxu0 0.0
  %417 = vmatpush2.msra.mxu0 %v371
  %418 = vmatprep.subr.mxu0 0.0
  %419 = vmatpush2.msra.mxu0 %v370
  %420 = vmatprep.subr.mxu0 0.0
  %421 = vmatpush2.msra.mxu0 %v369
  %422 = vmatprep.subr.mxu0 0.0
  %423 = vmatpush2.msra.mxu0 %v368
  %424 = vmatprep.subr.mxu0 0.0
  %425 = vmatpush2.msra.mxu0 %v367
  %426 = vmatprep.subr.mxu0 0.0
  %427 = vmatpush2.msra.mxu0 %v366
  %428 = vmatprep.subr.mxu0 0.0
  %429 = vmatpush2.msra.mxu0 %v365
  %430 = vmatprep.subr.mxu0 0.0
  %431 = vmatpush2.msra.mxu0 %v364
  %432 = vmatprep.subr.mxu0 0.0
  %433 = vmatpush2.msra.mxu0 %v363
  %434 = vmatprep.subr.mxu0 0.0
  %435 = vmatpush2.msra.mxu0 %v362
  %436 = vmatprep.subr.mxu0 0.0
  %437 = vmatpush2.msra.mxu0 %v361
  %438 = vmatprep.subr.mxu0 0.0
  %439 = vmatpush2.msra.mxu0 %v360
  %440 = vmatprep.mubr.f32.mxu0 %v337
  %441 = vmatmul.mubr.f32.gmra.mxu0 %v336
  %v442 = vpop.f32.mrf.mxu0
  %v443 = vadd.f32 0.0, %v442
  %v444 = vpop.f32.mrf.mxu0
  %445 = vmatprep.mubr.f32.mxu0 %v339
  %446 = vmatmul.mubr.f32.gmra.mxu0 %v338
  %v447 = vpop.f32.mrf.mxu0
  %v448 = vadd.f32 0.0, %v447
  %v449 = vpop.f32.mrf.mxu0
  %450 = vmatprep.mubr.f32.mxu0 %v341
  %451 = vmatmul.mubr.f32.gmra.mxu0 %v340
  %v452 = vpop.f32.mrf.mxu0
  %v453 = vadd.f32 0.0, %v452
  %v454 = vpop.f32.mrf.mxu0
  %455 = vmatprep.mubr.f32.mxu0 %v343
  %456 = vmatmul.mubr.f32.gmra.mxu0 %v342
  %v457 = vpop.f32.mrf.mxu0
  %v458 = vadd.f32 0.0, %v457
  %v459 = vpop.f32.mrf.mxu0
  %460 = vdwg.mxu0
  %vm461 = vcmask 80896
  %462 = vst.msk [vmem:[%s4] sm:$0xff] %vm461, %v443
  %463 = vst.msk [vmem:[%s4 + $0x8] sm:$0xff] %vm461, %v448
  %464 = vst.msk [vmem:[%s4 + $0x10] sm:$0xff] %vm461, %v453
  %465 = vst.msk [vmem:[%s4 + $0x18] sm:$0xff] %vm461, %v458
  // Predicated region
  $region18: #{tpu_custom_call.1} parent=0 // pred_check
    _
  $region19: #{tpu_custom_call.1} parent=0 // pred_check_branch
    %467 = sbr.rel (0) target = $region21
  $region20: #{tpu_custom_call.1} parent=0 // pred_region
    _
  $region21: #{tpu_custom_call.1} parent=0 // pred_fallthru
    _
  // Predicated region
  $region22: #{tpu_custom_call.1} parent=0 // pred_check
    _
  $region23: #{tpu_custom_call.1} parent=0 // pred_check_branch
    %469 = sbr.rel (0) target = $region25
  $region24: #{tpu_custom_call.1} parent=0 // pred_region
    _
  $region25: #{tpu_custom_call.1} parent=0 // pred_fallthru
    _

</llo_original>
